<compile_context>
chip_gen: v7x
topology: tpu7x:2x2x1
jax: 0.10.0
libtpu: 0.0.40
codegen_flags: <defaults>
</compile_context>

<pallas_src>
import math

import jax
import jax.numpy as jnp
from jax.experimental import pallas as pl
from jax.experimental.pallas import tpu as pltpu


# ---------------------------------------------------------------------------
# helpers
# ---------------------------------------------------------------------------
def _round_up(x: int, m: int) -> int:
    return ((x + m - 1) // m) * m


def _sublane_tile(dtype) -> int:
    # Native sublane tile height: 8 (4-byte), 16 (2-byte), 32 (1-byte dtypes).
    return max(8, 32 // jnp.dtype(dtype).itemsize)


def _vmem_budget() -> tuple[int, int]:
    """(tile_budget_bytes, vmem_limit_bytes), generation aware.

    v5e / v6e have 128 MiB physical VMEM -> use large tiles.
    v7x has 64 MiB per TensorCore   -> stay well under that.
    """
    phys = 64 * 1024 * 1024  # conservative default (v7x-class)
    try:
        phys = int(pltpu.get_tpu_info().vmem_capacity_bytes)
    except Exception:
        pass
    if phys >= 96 * 1024 * 1024:                      # v5e / v6e class
        return 48 * 1024 * 1024, 80 * 1024 * 1024
    return 28 * 1024 * 1024, 44 * 1024 * 1024         # v7x class


# ---------------------------------------------------------------------------
# kernels
# ---------------------------------------------------------------------------
def _make_kernel_lane(n: int, post: int):
    # Path A: x_ref (tp, n*post) lane-contiguous; out_refs[i] (tp, post).
    def kernel(x_ref, *out_refs):
        for i in range(n):
            out_refs[i][...] = x_ref[:, i * post:(i + 1) * post]
    return kernel


def _make_kernel_sublane(n: int):
    # Path B: x_ref (tp, n, tq); out_refs[i] (tp, tq).
    def kernel(x_ref, *out_refs):
        for i in range(n):
            out_refs[i][...] = x_ref[:, i, :]
    return kernel


# ---------------------------------------------------------------------------
# tile planning
# ---------------------------------------------------------------------------
def _choose_tp(pre: int, bytes_per_row: int, budget: int, sub: int) -> int:
    tp_max = max(1, budget // max(1, bytes_per_row))
    if pre <= tp_max:
        return pre                       # full dim -> always a legal block dim
    tp = (tp_max // sub) * sub
    # tp_max < sub: take one sublane tile anyway; vmem_limit has headroom.
    tp = max(tp, min(sub, pre))
    return min(tp, pre)


def _plan_tiles(pre: int, n: int, post: int, dtype, budget: int):
    """Returns (mode, tp, tq); mode '2d' keeps the whole n*post lane extent."""
    itemsize = jnp.dtype(dtype).itemsize
    sub = _sublane_tile(dtype)

    # --- Path A: 2D lane-contiguous input (pre, n*post) + n (pre, post) outs.
    # Per sublane-row footprint (double-buffered, lane-padded to 128).
    row_a = 2 * (_round_up(n * post, 128) + n * _round_up(post, 128)) * itemsize
    if row_a * min(sub, pre) <= budget:
        tp = _choose_tp(pre, row_a, budget, sub)
        return "2d", tp, post

    # --- Path B: 3D (tp, n, tq) block.  The n axis sits on sublanes and is
    # padded up to the dtype sublane tile -> account for that explicitly.
    def row_b(tq):
        lanes = _round_up(tq, 128)
        return 2 * (_round_up(n, sub) + n) * lanes * itemsize

    if post < 128:
        tq = post
    else:
        min_rows = min(sub, pre)
        k_max = max(1, budget // max(1, row_b(128) * min_rows))
        k_max = max(1, min(k_max, post // 128))
        # Remainder-aware: minimize the padded remainder column, prefer big tq.
        best = None
        for k in range(1, k_max + 1):
            tq_c = 128 * k
            key = (post % tq_c, -tq_c)
            if best is None or key < best[0]:
                best = (key, tq_c)
        tq = best[1]
    tp = _choose_tp(pre, row_b(tq), budget, sub)
    return "3d", tp, tq


def _maybe_split_for_megacore(pre: int, tp: int, sub: int, n_blocks: int) -> int:
    # Give v7x's two TensorCores something to shard when everything fits in a
    # single tile (one extra ~0.35us grid step: harmless on single-TC parts).
    if n_blocks > 1 or pre < 2 * sub:
        return tp
    half = _round_up((pre + 1) // 2, sub)
    return half if half < pre else tp


# ---------------------------------------------------------------------------
# public API
# ---------------------------------------------------------------------------
def unbind_ref(x: jax.Array, dim: int):
    dim = dim % x.ndim
    n = x.shape[dim]
    return tuple(
        jnp.squeeze(jax.lax.slice_in_dim(x, i, i + 1, axis=dim), axis=dim)
        for i in range(n)
    )


def unbind_pallas(x: jax.Array, dim: int, *, _budget_override: int | None = None):
    """Equivalent of torch.unbind(x, dim): tuple of arrays with `dim` removed."""
    dim = dim % x.ndim
    shape = x.shape
    n = int(shape[dim])
    slice_shape = shape[:dim] + shape[dim + 1:]

    if n == 0:
        return ()

    pre = int(math.prod(shape[:dim])) if dim > 0 else 1
    post = int(math.prod(shape[dim + 1:])) if dim + 1 < x.ndim else 1

    # Degenerate / hostile cases -> plain XLA slicing (still a pure copy).
    # TODO(synk): for n in the hundreds, a chunked-n Pallas variant would bound
    # per-step output-DMA count; not needed for the shipped test shapes (n=4,5).
    if x.size == 0 or n > 64:
        return unbind_ref(x, dim)

    itemsize = jnp.dtype(x.dtype).itemsize
    sub = _sublane_tile(x.dtype)
    budget, vmem_limit = _vmem_budget()
    if _budget_override is not None:
        budget = _budget_override

    mode, tp, tq = _plan_tiles(pre, n, post, x.dtype, budget)
    cost = pl.CostEstimate(flops=0, transcendentals=0,
                           bytes_accessed=2 * x.size * itemsize)

    if mode == "2d":
        tp = _maybe_split_for_megacore(pre, tp, sub, pl.cdiv(pre, tp))
        grid = (pl.cdiv(pre, tp),)
        x2 = x.reshape(pre, n * post)            # contiguous: no HBM transpose
        out = pl.pallas_call(
            _make_kernel_lane(n, post),
            out_shape=tuple(jax.ShapeDtypeStruct((pre, post), x.dtype)
                            for _ in range(n)),
            grid=grid,
            in_specs=[pl.BlockSpec((tp, n * post), lambda i: (i, 0))],
            out_specs=tuple(pl.BlockSpec((tp, post), lambda i: (i, 0))
                            for _ in range(n)),
            compiler_params=pltpu.CompilerParams(
                dimension_semantics=("parallel",),
                vmem_limit_bytes=vmem_limit),
            cost_estimate=cost,
        )(x2)
    else:
        n_blocks = pl.cdiv(pre, tp) * pl.cdiv(post, tq)
        tp = _maybe_split_for_megacore(pre, tp, sub, n_blocks)
        grid = (pl.cdiv(pre, tp), pl.cdiv(post, tq))
        x3 = x.reshape(pre, n, post)             # contiguous: no HBM transpose
        out = pl.pallas_call(
            _make_kernel_sublane(n),
            out_shape=tuple(jax.ShapeDtypeStruct((pre, post), x.dtype)
                            for _ in range(n)),
            grid=grid,
            in_specs=[pl.BlockSpec((tp, n, tq), lambda i, j: (i, 0, j))],
            out_specs=tuple(pl.BlockSpec((tp, tq), lambda i, j: (i, j))
                            for _ in range(n)),
            compiler_params=pltpu.CompilerParams(
                dimension_semantics=("parallel", "parallel"),
                vmem_limit_bytes=vmem_limit),
            cost_estimate=cost,
        )(x3)

    return tuple(o.reshape(slice_shape) for o in out)


# ---------------------------------------------------------------------------
# self-test
# ---------------------------------------------------------------------------
def _check(x, dim, **kw):
    out = jax.block_until_ready(unbind_pallas(x, dim, **kw))
    ref = unbind_ref(x, dim)
    assert len(out) == x.shape[dim % x.ndim]
    for o, r in zip(out, ref):
        assert o.shape == r.shape, (o.shape, r.shape)
        assert jnp.array_equal(o, r), "mismatch vs reference"
    return out


if __name__ == "__main__":
    key = jax.random.PRNGKey(0)
    k1, k2, k3, k4 = jax.random.split(key, 4)

    # test case "randn_4d": x = randn(1, 5, 4, 3), dim = 2
    x4d = jax.random.normal(k1, (1, 5, 4, 3), dtype=jnp.float32)
    out4d = _check(x4d, 2)
    assert len(out4d) == 4 and out4d[0].shape == (1, 5, 3)

    # test case "randn_3d": x = randn(5, 4, 3), dim = 0
    x3d = jax.random.normal(k2, (5, 4, 3), dtype=jnp.float32)
    out3d = _check(x3d, 0)
    assert len(out3d) == 5 and out3d[0].shape == (4, 3)

    # medium case: exercises Path A with a tiled pre axis / megacore split.
    xm = jax.random.normal(k3, (1024, 4, 512), dtype=jnp.float32)
    outm = _check(xm, 1)
    assert len(outm) == 4 and outm[0].shape == (1024, 512)

    # forced Path B (tiny budget): 3D sublane-select path with a
    # non-divisible lane remainder (post = 2100).
    xt = jax.random.normal(k4, (2, 3, 2100), dtype=jnp.float32)
    outt = _check(xt, 1, _budget_override=4096)
    assert len(outt) == 3 and outt[0].shape == (2, 2100)

    print("KERNEL_OK")
</pallas_src>

<mosaic_0001>
module attributes {stable_mosaic.version = 11 : i64} {
  func.func @kernel(%arg0: i32, %arg1: memref<5x12xf32, #tpu.memory_space<vmem>>, %arg2: memref<5x3xf32, #tpu.memory_space<vmem>>, %arg3: memref<5x3xf32, #tpu.memory_space<vmem>>, %arg4: memref<5x3xf32, #tpu.memory_space<vmem>>, %arg5: memref<5x3xf32, #tpu.memory_space<vmem>>) attributes {dimension_semantics = [#tpu.dimension_semantics<parallel>], iteration_bounds = array<i64: 1>, scalar_prefetch = 0 : i64, scratch_operands = 0 : i64, tpu.core_type = #tpu.core_type<tc>, window_params = [{transform_indices = @transform_0, window_bounds = array<i64: 5, 12>}, {transform_indices = @transform_1, window_bounds = array<i64: 5, 3>}, {transform_indices = @transform_2, window_bounds = array<i64: 5, 3>}, {transform_indices = @transform_3, window_bounds = array<i64: 5, 3>}, {transform_indices = @transform_4, window_bounds = array<i64: 5, 3>}]} {
    %c0 = arith.constant 0 : index
    %c0_0 = arith.constant 0 : index
    %0 = vector.load %arg1[%c0, %c0_0] : memref<5x12xf32, #tpu.memory_space<vmem>>, vector<5x3xf32>
    %c0_1 = arith.constant 0 : index
    %c0_2 = arith.constant 0 : index
    %1 = vector.load %arg2[%c0_1, %c0_2] : memref<5x3xf32, #tpu.memory_space<vmem>>, vector<5x3xf32>
    tpu.vector_store %arg2[%c0_1, %c0_2], %0 {strides = array<i32>} : memref<5x3xf32, #tpu.memory_space<vmem>>, vector<5x3xf32>,
    %c0_3 = arith.constant 0 : index
    %c3 = arith.constant 3 : index
    %2 = vector.load %arg1[%c0_3, %c3] : memref<5x12xf32, #tpu.memory_space<vmem>>, vector<5x3xf32>
    %c0_4 = arith.constant 0 : index
    %c0_5 = arith.constant 0 : index
    %3 = vector.load %arg3[%c0_4, %c0_5] : memref<5x3xf32, #tpu.memory_space<vmem>>, vector<5x3xf32>
    tpu.vector_store %arg3[%c0_4, %c0_5], %2 {strides = array<i32>} : memref<5x3xf32, #tpu.memory_space<vmem>>, vector<5x3xf32>,
    %c0_6 = arith.constant 0 : index
    %c6 = arith.constant 6 : index
    %4 = vector.load %arg1[%c0_6, %c6] : memref<5x12xf32, #tpu.memory_space<vmem>>, vector<5x3xf32>
    %c0_7 = arith.constant 0 : index
    %c0_8 = arith.constant 0 : index
    %5 = vector.load %arg4[%c0_7, %c0_8] : memref<5x3xf32, #tpu.memory_space<vmem>>, vector<5x3xf32>
    tpu.vector_store %arg4[%c0_7, %c0_8], %4 {strides = array<i32>} : memref<5x3xf32, #tpu.memory_space<vmem>>, vector<5x3xf32>,
    %c0_9 = arith.constant 0 : index
    %c9 = arith.constant 9 : index
    %6 = vector.load %arg1[%c0_9, %c9] : memref<5x12xf32, #tpu.memory_space<vmem>>, vector<5x3xf32>
    %c0_10 = arith.constant 0 : index
    %c0_11 = arith.constant 0 : index
    %7 = vector.load %arg5[%c0_10, %c0_11] : memref<5x3xf32, #tpu.memory_space<vmem>>, vector<5x3xf32>
    tpu.vector_store %arg5[%c0_10, %c0_11], %6 {strides = array<i32>} : memref<5x3xf32, #tpu.memory_space<vmem>>, vector<5x3xf32>,
    return
  }
  func.func @transform_0(%arg0: i32) -> (i32, i32) {
    %c0_i32 = arith.constant 0 : i32
    %c0_i32_0 = arith.constant 0 : i32
    return %arg0, %c0_i32 : i32, i32
  }
  func.func @transform_1(%arg0: i32) -> (i32, i32) {
    %c0_i32 = arith.constant 0 : i32
    %c0_i32_0 = arith.constant 0 : i32
    return %arg0, %c0_i32 : i32, i32
  }
  func.func @transform_2(%arg0: i32) -> (i32, i32) {
    %c0_i32 = arith.constant 0 : i32
    %c0_i32_0 = arith.constant 0 : i32
    return %arg0, %c0_i32 : i32, i32
  }
  func.func @transform_3(%arg0: i32) -> (i32, i32) {
    %c0_i32 = arith.constant 0 : i32
    %c0_i32_0 = arith.constant 0 : i32
    return %arg0, %c0_i32 : i32, i32
  }
  func.func @transform_4(%arg0: i32) -> (i32, i32) {
    %c0_i32 = arith.constant 0 : i32
    %c0_i32_0 = arith.constant 0 : i32
    return %arg0, %c0_i32 : i32, i32
  }
}

</mosaic_0001>

<llo_original>
// kernel: tpu_custom_call.1
$region0: #{tpu_custom_call.1}
  #allocation0 [shape = 'u32[]', space=smem, size = 0x4, offset = 0x4, fixed_abs, tag = 'smem constant byte address 0x4 - core index']
  #allocation1 [shape = 'u32[144,128]{1,0:T(1,128)}', space=vmem, size = 0x12000, scoped, tag = 'internal scratch']
  %s0 = inlined_call_operand.hbm [shape: f32[5,12], index: 0, kind: input, shape index: {}]
  %s1 = inlined_call_operand.vmem [shape: f32[5,3], index: 1, kind: output, shape index: {0}]
  %s2 = inlined_call_operand.vmem [shape: f32[5,3], index: 2, kind: output, shape index: {1}]
  %s3 = inlined_call_operand.vmem [shape: f32[5,3], index: 3, kind: output, shape index: {2}]
  %s4 = inlined_call_operand.vmem [shape: f32[5,3], index: 4, kind: output, shape index: {3}]
  %5 = xla_tuple %s1, %s2, %s3, %s4
  %s6 = sld [smem:[#allocation0]]
  $region42: #{tpu_custom_call.1} parent=0
    _
  %s8 = ssub.s32 1, %s6
  %s9 = scalar_select 0, %s8, %s6
  $region1: #{tpu_custom_call.1} parent=0
    #allocation2 [shape = 'u8[4096]{0}', space=vmem, size = 0x1000, scoped, tag = 'input window, operand 0, single buffered']
    #allocation3 [shape = 's32[1]{0}', space=sflag, size = 0x4, scoped, tag = 'scoped memory for tpu_custom_call.1']
    %10 = vsyncpa [#allocation3], 0
    // Predicated region
    $region2: #{tpu_custom_call.1} parent=1 // pred_check
      _
    $region3: #{tpu_custom_call.1} parent=1 // pred_check_branch
      %12 = sbr.rel (0) target = $region5
    $region4: #{tpu_custom_call.1} parent=1 // pred_region
      %s14 = ssub.s32 128, 128
      %15 = vsyncadd [#allocation3], %s14
      %s17 = sshll.u32 [#allocation2], 4
      %s18 = int_to_ptr.vmem [resolvable:$true] %s17
      %20 = dma.hbm_to_vmem [thread:$0]  %s0, 128, %s18, [#allocation3]
    $region5: #{tpu_custom_call.1} parent=1 // pred_fallthru
      _
    // Predicated region
    $region6: #{tpu_custom_call.1} parent=1 // pred_check
      _
    $region7: #{tpu_custom_call.1} parent=1 // pred_check_branch
      %22 = sbr.rel (0) target = $region9
    $region8: #{tpu_custom_call.1} parent=1 // pred_region
      %23 = dma.done [#allocation3], 128
    $region9: #{tpu_custom_call.1} parent=1 // pred_fallthru
      _
    %v24 = vld [vmem:[#allocation2] sm:$0x1f]
    %vm25 = vcmask 20480
    %26 = vst.msk [vmem:[%s1] sm:$0x1f] %vm25, %v24
    %v27 = vld [vmem:[#allocation2] sm:$0x1f]
    %29 = vrot.lane.b32.xlu0 %v27, 125
    %v30 = vpop.permute.xlu0 %29
    %32 = vst.msk [vmem:[%s2] sm:$0x1f] %vm25, %v30
    %v33 = vld [vmem:[#allocation2] sm:$0x1f]
    %35 = vrot.lane.b32.xlu0 %v33, 122
    %v36 = vpop.permute.xlu0 %35
    %38 = vst.msk [vmem:[%s3] sm:$0x1f] %vm25, %v36
    %v39 = vld [vmem:[#allocation2] sm:$0x1f]
    %41 = vrot.lane.b32.xlu0 %v39, 119
    %v42 = vpop.permute.xlu0 %41
    %44 = vst.msk [vmem:[%s4] sm:$0x1f] %vm25, %v42
    // Predicated region
    $region10: #{tpu_custom_call.1} parent=1 // pred_check
      _
    $region11: #{tpu_custom_call.1} parent=1 // pred_check_branch
      %46 = sbr.rel (0) target = $region13
    $region12: #{tpu_custom_call.1} parent=1 // pred_region
      _
    $region13: #{tpu_custom_call.1} parent=1 // pred_fallthru
      _
    // Predicated region
    $region14: #{tpu_custom_call.1} parent=1 // pred_check
      _
    $region15: #{tpu_custom_call.1} parent=1 // pred_check_branch
      %48 = sbr.rel (0) target = $region17
    $region16: #{tpu_custom_call.1} parent=1 // pred_region
      _
    $region17: #{tpu_custom_call.1} parent=1 // pred_fallthru
      _
    // Predicated region
    $region18: #{tpu_custom_call.1} parent=1 // pred_check
      _
    $region19: #{tpu_custom_call.1} parent=1 // pred_check_branch
      %50 = sbr.rel (0) target = $region21
    $region20: #{tpu_custom_call.1} parent=1 // pred_region
      _
    $region21: #{tpu_custom_call.1} parent=1 // pred_fallthru
      _
    // Predicated region
    $region22: #{tpu_custom_call.1} parent=1 // pred_check
      _
    $region23: #{tpu_custom_call.1} parent=1 // pred_check_branch
      %52 = sbr.rel (0) target = $region25
    $region24: #{tpu_custom_call.1} parent=1 // pred_region
      _
    $region25: #{tpu_custom_call.1} parent=1 // pred_fallthru
      _
    // Predicated region
    $region26: #{tpu_custom_call.1} parent=1 // pred_check
      _
    $region27: #{tpu_custom_call.1} parent=1 // pred_check_branch
      %54 = sbr.rel (0) target = $region29
    $region28: #{tpu_custom_call.1} parent=1 // pred_region
      _
    $region29: #{tpu_custom_call.1} parent=1 // pred_fallthru
      _
    // Predicated region
    $region30: #{tpu_custom_call.1} parent=1 // pred_check
      _
    $region31: #{tpu_custom_call.1} parent=1 // pred_check_branch
      %56 = sbr.rel (0) target = $region33
    $region32: #{tpu_custom_call.1} parent=1 // pred_region
      _
    $region33: #{tpu_custom_call.1} parent=1 // pred_fallthru
      _
    // Predicated region
    $region34: #{tpu_custom_call.1} parent=1 // pred_check
      _
    $region35: #{tpu_custom_call.1} parent=1 // pred_check_branch
      %58 = sbr.rel (0) target = $region37
    $region36: #{tpu_custom_call.1} parent=1 // pred_region
      _
    $region37: #{tpu_custom_call.1} parent=1 // pred_fallthru
      _
    // Predicated region
    $region38: #{tpu_custom_call.1} parent=1 // pred_check
      _
    $region39: #{tpu_custom_call.1} parent=1 // pred_check_branch
      %60 = sbr.rel (0) target = $region41
    $region40: #{tpu_custom_call.1} parent=1 // pred_region
      _
    $region41: #{tpu_custom_call.1} parent=1 // pred_fallthru
      _
    %61 = vsyncpa [#allocation3], 1

</llo_original>
